<compile_context>
chip_gen: v6e
topology: v6e:2x2x1
jax: 0.10.0
libtpu: 0.0.40
codegen_flags: <defaults>
</compile_context>

<pallas_src>
import functools
import math

import jax
import jax.numpy as jnp
import numpy as np
from jax.experimental import pallas as pl
from jax.experimental.pallas import tpu as pltpu

MXU_DTYPE = jnp.bfloat16  # MXU-native operand dtype; accumulation stays f32


def _round_up(x, m):
    return (x + m - 1) // m * m


@functools.lru_cache(maxsize=None)
def _vmem_limit():
    """Generation-aware scoped-VMEM budget (~75% of physical, capped)."""
    try:
        cap = int(pltpu.get_tpu_info().vmem_capacity_bytes)
    except Exception:
        cap = 64 * 1024 * 1024  # conservative (v7x-sized) fallback
    return int(min(cap * 3 // 4, 112 * 1024 * 1024))


# ----------------------------- Pallas kernels ------------------------------ #

def _conv1x1_kernel(x_ref, w_ref, b_ref, o_ref):
    # x_ref: (TP, Cin)  w_ref: (Cin, Cout) bf16  b_ref: (1, Cout)  o_ref: (TP, Cout)
    acc = jnp.dot(x_ref[...].astype(w_ref.dtype), w_ref[...],
                  preferred_element_type=jnp.float32)
    o_ref[...] = (acc + b_ref[...]).astype(o_ref.dtype)


def _conv1x1_add_kernel(x_ref, w_ref, b_ref, td_ref, o_ref):
    # Fallback lateral path: 1x1 conv + bias + pre-materialised top-down add.
    acc = jnp.dot(x_ref[...].astype(w_ref.dtype), w_ref[...],
                  preferred_element_type=jnp.float32)
    o_ref[...] = (acc + b_ref[...] + td_ref[...].astype(jnp.float32)).astype(o_ref.dtype)


def _lateral_fused_kernel(x_ref, w_ref, b_ref, td_ref, o_ref, *, fh):
    """1x1 lateral conv + bias + nearest top-down add.

    The H-repeat (factor fh) of the top-down feature happens in-kernel (the
    BlockSpec delivers the half-height source block), so the upsampled tensor
    is never materialised at full size in HBM.
    """
    th, wd, cin = x_ref.shape
    cout = o_ref.shape[-1]
    x = x_ref[...].astype(w_ref.dtype).reshape(th * wd, cin)
    acc = jnp.dot(x, w_ref[...], preferred_element_type=jnp.float32)
    acc = acc.reshape(th, wd, cout) + b_ref[...]
    td = td_ref[...].astype(jnp.float32)               # (th // fh, W, Cout)
    if fh > 1:
        td = jnp.repeat(td, fh, axis=0)                # nearest repeat along H (leading dim)
    o_ref[...] = (acc + td).astype(o_ref.dtype)


def _conv3x3_kernel(x_hbm, w_ref, b_ref, o_ref, xbuf, sem):
    """3x3 conv, pad=1, on one (tile_h, W) row tile of one image.

    x_hbm : (N, H, W, Cin) input, left in HBM (pl.ANY); rows DMAd manually.
    w_ref : (3, 3*Cin, Cout) resident weights (bf16); for each ky the three kx
            taps are folded into the contraction dim (kx outer, cin inner).
    b_ref : (1, Cout) f32 bias.
    o_ref : (tile_h, W, Cout) output row tile (batch dim squeezed).
    xbuf  : VMEM scratch (2, tile_h + 2, W, Cin) -- double-buffered tile + halo.
    sem   : DMA semaphores (2, 3) -- (slot, {mid, top, bot}).
    """
    n, t = pl.program_id(0), pl.program_id(1)
    n_imgs, nt = pl.num_programs(0), pl.num_programs(1)
    tile_h, wd, cout = o_ref.shape
    cin = xbuf.shape[-1]
    h = x_hbm.shape[1]

    step = n * nt + t
    slot = step % 2

    def start_fetch(src_n, src_t, dst_slot):
        row0 = pl.multiple_of(src_t * tile_h, tile_h)
        top = jnp.maximum(row0 - 1, 0)              # clamped halo sources; rows that
        bot = jnp.minimum(row0 + tile_h, h - 1)     # fall outside are masked below.
        pltpu.make_async_copy(x_hbm.at[src_n, pl.ds(row0, tile_h)],
                              xbuf.at[dst_slot, pl.ds(1, tile_h)],
                              sem.at[dst_slot, 0]).start()
        pltpu.make_async_copy(x_hbm.at[src_n, pl.ds(top, 1)],
                              xbuf.at[dst_slot, pl.ds(0, 1)],
                              sem.at[dst_slot, 1]).start()
        pltpu.make_async_copy(x_hbm.at[src_n, pl.ds(bot, 1)],
                              xbuf.at[dst_slot, pl.ds(tile_h + 1, 1)],
                              sem.at[dst_slot, 2]).start()

    @pl.when(step == 0)                             # prime the pipeline
    def _():
        start_fetch(n, t, slot)

    @pl.when(step + 1 < n_imgs * nt)                # prefetch next step's rows
    def _():
        nxt = step + 1
        start_fetch(nxt // nt, nxt % nt, 1 - slot)

    # Wait for the current tile (descriptors only supply matching byte counts).
    pltpu.make_async_copy(x_hbm.at[n, pl.ds(0, tile_h)],
                          xbuf.at[slot, pl.ds(1, tile_h)], sem.at[slot, 0]).wait()
    pltpu.make_async_copy(x_hbm.at[n, pl.ds(0, 1)],
                          xbuf.at[slot, pl.ds(0, 1)], sem.at[slot, 1]).wait()
    pltpu.make_async_copy(x_hbm.at[n, pl.ds(0, 1)],
                          xbuf.at[slot, pl.ds(tile_h + 1, 1)], sem.at[slot, 2]).wait()

    xv = xbuf[slot]                                              # (tile_h+2, W, Cin)
    row = jax.lax.broadcasted_iota(jnp.int32, xv.shape, 0)
    col = jax.lax.broadcasted_iota(jnp.int32, xv.shape, 1)
    # Zero halo rows that fall outside the image (conv padding = 1).
    halo = ((row == 0) & (t == 0)) | ((row == tile_h + 1) & (t == nt - 1))
    xv = jnp.where(halo, 0.0, xv)
    # kx = 0 / kx = 2 taps via XLU rolls along W + zeroing the wrapped column
    # (no sublane-misaligned slices, no concatenated zero-padding copy).
    xl = jnp.where(col == 0, 0.0, pltpu.roll(xv, shift=1, axis=1))
    xr = jnp.where(col == wd - 1, 0.0, pltpu.roll(xv, shift=wd - 1, axis=1))
    xcat = jnp.concatenate([xl, xv, xr], axis=-1).astype(w_ref.dtype)  # (th+2, W, 3*Cin)

    # 3 MXU matmuls (K = 3*Cin) accumulated in vregs; single store at the end.
    acc = jnp.zeros((tile_h * wd, cout), jnp.float32)
    for ky in range(3):
        patch = xcat[ky:ky + tile_h].reshape(tile_h * wd, 3 * cin)
        acc = acc + jnp.dot(patch, w_ref[ky], preferred_element_type=jnp.float32)
    res = acc.reshape(tile_h, wd, cout) + b_ref[...]
    o_ref[...] = res.astype(o_ref.dtype)


# ------------------------------ Wrappers ----------------------------------- #

def conv1x1(x_nhwc, w, b, top_down=None, tile_p=1024):
    """1x1 conv (== matmul over channels), optionally + a materialised top_down.

    w: (Cin, Cout), b: (Cout,).  Tiled over P = N*H*W rows with a cdiv grid
    (no jnp.pad HBM copies; the ragged last block's extra rows are discarded).
    """
    n, h, wd, cin = x_nhwc.shape
    cout = w.shape[1]
    p = n * h * wd
    tile = int(min(tile_p, _round_up(p, 8)))

    in_specs = [
        pl.BlockSpec((tile, cin), lambda i: (i, 0)),
        pl.BlockSpec((cin, cout), lambda i: (0, 0)),
        pl.BlockSpec((1, cout), lambda i: (0, 0)),
    ]
    args = [x_nhwc.reshape(p, cin), w.astype(MXU_DTYPE), b.reshape(1, cout)]
    kernel = _conv1x1_kernel
    if top_down is not None:
        in_specs.append(pl.BlockSpec((tile, cout), lambda i: (i, 0)))
        args.append(top_down.reshape(p, cout))
        kernel = _conv1x1_add_kernel

    out = pl.pallas_call(
        kernel,
        out_shape=jax.ShapeDtypeStruct((p, cout), x_nhwc.dtype),
        grid=(pl.cdiv(p, tile),),
        in_specs=in_specs,
        out_specs=pl.BlockSpec((tile, cout), lambda i: (i, 0)),
        compiler_params=pltpu.CompilerParams(
            dimension_semantics=("parallel",),
            vmem_limit_bytes=_vmem_limit()),
    )(*args)
    return out.reshape(n, h, wd, cout)


def lateral_fused(x_nhwc, w, b, td_src):
    """Lateral 1x1 conv + bias + nearest top-down add with in-kernel H-repeat.

    td_src: (N, Hs, W, Cout) -- top-down feature already replicated along W on
    the small source tensor; the H repeat (factor fh = H // Hs) is fused.
    """
    n, h, wd, cin = x_nhwc.shape
    cout = w.shape[1]
    hs = td_src.shape[1]
    fh = h // hs

    limit = _vmem_limit()
    bytes_per_row = wd * (2 * cin + 4 * cout) * 4
    cap = max(fh, (limit // 4) // max(1, bytes_per_row))
    th = min(h, cap)
    th = max(fh, th - th % fh)       # source rows per tile must be integral

    kernel = functools.partial(_lateral_fused_kernel, fh=fh)
    return pl.pallas_call(
        kernel,
        out_shape=jax.ShapeDtypeStruct((n, h, wd, cout), x_nhwc.dtype),
        grid=(n, pl.cdiv(h, th)),
        in_specs=[
            pl.BlockSpec((None, th, wd, cin), lambda i, j: (i, j, 0, 0)),
            pl.BlockSpec((cin, cout), lambda i, j: (0, 0)),
            pl.BlockSpec((1, cout), lambda i, j: (0, 0)),
            pl.BlockSpec((None, th // fh, wd, cout), lambda i, j: (i, j, 0, 0)),
        ],
        out_specs=pl.BlockSpec((None, th, wd, cout), lambda i, j: (i, j, 0, 0)),
        compiler_params=pltpu.CompilerParams(
            dimension_semantics=("parallel", "parallel"),
            vmem_limit_bytes=_vmem_limit()),
    )(x_nhwc, w.astype(MXU_DTYPE), b.reshape(1, cout), td_src)


def conv3x3(x_nhwc, w, b):
    """3x3 conv, stride 1, padding 1.  w: (3, 3, Cin, Cout), b: (Cout,).

    Grid over (batch, H row tiles); manual, double-buffered halo DMA keeps the
    input in HBM so VMEM use is bounded by the row tile, not the feature map.
    """
    n, h, wd, cin = x_nhwc.shape
    cout = w.shape[-1]
    # Fold the 3 kx taps into the contraction dim: (3, 3*Cin, Cout), kx outer.
    w3 = w.reshape(3, 3 * cin, cout).astype(MXU_DTYPE)

    limit = _vmem_limit()
    # Rough per-row VMEM: 2x input rows (double buffer) + 2x output rows
    # (Pallas output pipelining) + working set for xl/xr/xcat.
    bytes_per_row = wd * (8 * cin + 2 * cout) * 4
    cap = max(1, (limit // 3) // max(1, bytes_per_row))
    if h <= cap:
        tile_h = h                                  # whole image height per step
    else:
        tile_h = max(8, cap - cap % 8)              # layout-friendly row tile
    # cdiv-style grid; zero bottom padding preserves pad=1 conv semantics and
    # keeps tile_h large even for awkward (prime) H.
    h_pad = _round_up(h, tile_h)
    xp = x_nhwc if h_pad == h else jnp.pad(x_nhwc, ((0, 0), (0, h_pad - h), (0, 0), (0, 0)))
    nt = h_pad // tile_h

    out = pl.pallas_call(
        _conv3x3_kernel,
        out_shape=jax.ShapeDtypeStruct((n, h_pad, wd, cout), x_nhwc.dtype),
        grid=(n, nt),
        in_specs=[
            pl.BlockSpec(memory_space=pl.ANY),                        # input stays in HBM
            pl.BlockSpec((3, 3 * cin, cout), lambda i, j: (0, 0, 0)),  # resident weights
            pl.BlockSpec((1, cout), lambda i, j: (0, 0)),              # resident bias
        ],
        out_specs=pl.BlockSpec((None, tile_h, wd, cout), lambda i, j: (i, j, 0, 0)),
        scratch_shapes=[
            pltpu.VMEM((2, tile_h + 2, wd, cin), x_nhwc.dtype),   # double-buffered rows+halo
            pltpu.SemaphoreType.DMA((2, 3)),
        ],
        compiler_params=pltpu.CompilerParams(
            # sequential so the cross-step prefetch chain is valid on every core
            dimension_semantics=("arbitrary", "arbitrary"),
            vmem_limit_bytes=limit),
    )(xp, w3, b.reshape(1, cout))
    return out[:, :h] if h_pad != h else out


def _nearest_resize_w(x, out_w):
    """Nearest resize along W only (on the small top-down source tensor)."""
    in_w = x.shape[2]
    wi = (jnp.arange(out_w) * in_w // out_w).astype(jnp.int32)
    return x[:, :, wi, :]


def nearest_resize_nhwc(x, out_h, out_w):
    """F.interpolate(mode='nearest') semantics: src = floor(dst * in / out)."""
    in_h, in_w = x.shape[1], x.shape[2]
    hi = (jnp.arange(out_h) * in_h // out_h).astype(jnp.int32)
    wi = (jnp.arange(out_w) * in_w // out_w).astype(jnp.int32)
    return x[:, hi][:, :, wi]


# ------------------------------ FPN module --------------------------------- #

def init_fpn_params(key, in_channels_list, out_channels, dtype=jnp.float32):
    """Kaiming-uniform (a=1) weights, zero biases (matches the reference init)."""
    params = []
    for cin in in_channels_list:
        if cin == 0:
            continue
        key, k1, k2 = jax.random.split(key, 3)
        b1 = math.sqrt(3.0 / cin)                      # 1x1: fan_in = cin
        w_inner = jax.random.uniform(k1, (cin, out_channels), dtype, -b1, b1)
        b2 = math.sqrt(3.0 / (out_channels * 9))       # 3x3: fan_in = cout * 9
        w_layer = jax.random.uniform(k2, (3, 3, out_channels, out_channels), dtype, -b2, b2)
        params.append({
            "w_inner": w_inner,
            "b_inner": jnp.zeros((out_channels,), dtype),
            "w_layer": w_layer,
            "b_layer": jnp.zeros((out_channels,), dtype),
        })
    return params


def fpn_forward_nhwc(feats, params):
    """feats: list of NHWC tensors ordered by increasing depth -> list of NHWC outputs."""
    last_inner = conv1x1(feats[-1], params[-1]["w_inner"], params[-1]["b_inner"])
    results = [conv3x3(last_inner, params[-1]["w_layer"], params[-1]["b_layer"])]

    for idx in range(len(feats) - 2, -1, -1):
        h, w = feats[idx].shape[1:3]
        hs = last_inner.shape[1]
        p = params[idx]
        if h % hs == 0:
            # Fused path: cheap W-replication on the small source tensor, then
            # lateral 1x1 + bias + in-kernel H-repeat + add in one kernel.
            td_src = _nearest_resize_w(last_inner, w)
            last_inner = lateral_fused(feats[idx], p["w_inner"], p["b_inner"], td_src)
        else:
            # TODO(synk): non-integer H ratios fall back to a materialised gather.
            td = nearest_resize_nhwc(last_inner, h, w)
            last_inner = conv1x1(feats[idx], p["w_inner"], p["b_inner"], top_down=td)
        results.insert(0, conv3x3(last_inner, p["w_layer"], p["b_layer"]))

    # TODO(synk): extra_blocks (e.g. LastLevelMaxPool) not part of this module's default path.
    return results


def fpn_forward(x_dict, params):
    """x_dict: OrderedDict[name -> NCHW tensor], ordered by increasing depth.

    NCHW boundary transposes are layout glue only; callers that can work in
    NHWC should use fpn_forward_nhwc directly and skip them.
    """
    names = list(x_dict.keys())
    feats = [jnp.transpose(f, (0, 2, 3, 1)) for f in x_dict.values()]  # NCHW -> NHWC
    results = fpn_forward_nhwc(feats, params)
    return {k: jnp.transpose(v, (0, 3, 1, 2)) for k, v in zip(names, results)}  # NHWC -> NCHW


# ------------------------- pure-JAX reference (check) ----------------------- #

def _conv2d_ref(x_nhwc, w_hwio, b, pad):
    out = jax.lax.conv_general_dilated(
        x_nhwc, w_hwio, window_strides=(1, 1), padding=pad,
        dimension_numbers=("NHWC", "HWIO", "NHWC"),
        precision=jax.lax.Precision.HIGHEST)
    return out + b


def fpn_forward_ref(x_dict, params):
    names = list(x_dict.keys())
    feats = [jnp.transpose(f, (0, 2, 3, 1)) for f in x_dict.values()]

    def inner(x, p):
        cin, cout = p["w_inner"].shape
        return _conv2d_ref(x, p["w_inner"].reshape(1, 1, cin, cout), p["b_inner"], "VALID")

    def layer(x, p):
        return _conv2d_ref(x, p["w_layer"], p["b_layer"], [(1, 1), (1, 1)])

    last_inner = inner(feats[-1], params[-1])
    results = [layer(last_inner, params[-1])]
    for idx in range(len(feats) - 2, -1, -1):
        h, w = feats[idx].shape[1], feats[idx].shape[2]
        td = nearest_resize_nhwc(last_inner, h, w)
        last_inner = inner(feats[idx], params[idx]) + td
        results.insert(0, layer(last_inner, params[idx]))
    return {k: jnp.transpose(v, (0, 3, 1, 2)) for k, v in zip(names, results)}


# --------------------------------- main ------------------------------------ #

if __name__ == "__main__":
    key = jax.random.PRNGKey(0)

    in_channels_list = [4, 8, 16]
    out_channels = 8
    batch = 2
    spatial = [16, 8, 4]  # decreasing resolution with increasing depth

    key, kp = jax.random.split(key)
    params = init_fpn_params(kp, in_channels_list, out_channels)

    x_dict = {}
    for i, (cin, s) in enumerate(zip(in_channels_list, spatial)):
        key, kx = jax.random.split(key)
        x_dict[f"feat{i}"] = jax.random.normal(kx, (batch, cin, s, s), jnp.float32)  # NCHW

    out = fpn_forward(x_dict, params)
    out = jax.tree_util.tree_map(jax.block_until_ready, out)

    ref = fpn_forward_ref(x_dict, params)

    for i, name in enumerate(out):
        assert out[name].shape == (batch, out_channels, spatial[i], spatial[i]), out[name].shape
        np.testing.assert_allclose(np.asarray(out[name]), np.asarray(ref[name]),
                                   rtol=2e-2, atol=2e-2)

    print("KERNEL_OK")
</pallas_src>

<mosaic_0001>
module attributes {stable_mosaic.version = 11 : i64} {
  func.func @_conv1x1_kernel(%arg0: i32, %arg1: memref<32x16xf32, #tpu.memory_space<vmem>>, %arg2: memref<16x8xbf16, #tpu.memory_space<vmem>>, %arg3: memref<1x8xf32, #tpu.memory_space<vmem>>, %arg4: memref<32x8xf32, #tpu.memory_space<vmem>>) attributes {dimension_semantics = [#tpu.dimension_semantics<parallel>], iteration_bounds = array<i64: 1>, scalar_prefetch = 0 : i64, scratch_operands = 0 : i64, tpu.core_type = #tpu.core_type<tc>, window_params = [{transform_indices = @transform_0, window_bounds = array<i64: 32, 16>}, {pipeline_mode = #tpu.pipeline_mode<synchronous>, transform_indices = @transform_1, window_bounds = array<i64: 16, 8>}, {pipeline_mode = #tpu.pipeline_mode<synchronous>, transform_indices = @transform_2, window_bounds = array<i64: 1, 8>}, {transform_indices = @transform_3, window_bounds = array<i64: 32, 8>}]} {
    %c0 = arith.constant 0 : index
    %c0_0 = arith.constant 0 : index
    %0 = vector.load %arg1[%c0, %c0_0] : memref<32x16xf32, #tpu.memory_space<vmem>>, vector<32x16xf32>
    %1 = arith.truncf %0 : vector<32x16xf32> to vector<32x16xbf16>
    %c0_1 = arith.constant 0 : index
    %c0_2 = arith.constant 0 : index
    %2 = vector.load %arg2[%c0_1, %c0_2] : memref<16x8xbf16, #tpu.memory_space<vmem>>, vector<16x8xbf16>
    %cst = arith.constant dense<0.000000e+00> : vector<32x8xf32>
    %3 = tpu.matmul %1, %2, %cst {dimension_numbers = #tpu.dot_dimension_numbers<[1], [0], [0], [1], [0, 0, 1, 1], [], []>} : vector<32x16xbf16>, vector<16x8xbf16>, vector<32x8xf32> -> vector<32x8xf32>
    %c0_3 = arith.constant 0 : index
    %c0_4 = arith.constant 0 : index
    %4 = vector.load %arg3[%c0_3, %c0_4] : memref<1x8xf32, #tpu.memory_space<vmem>>, vector<1x8xf32>
    %5 = vector.broadcast %4 : vector<1x8xf32> to vector<32x8xf32>
    %6 = arith.addf %3, %5 : vector<32x8xf32>
    %c0_5 = arith.constant 0 : index
    %c0_6 = arith.constant 0 : index
    %7 = vector.load %arg4[%c0_5, %c0_6] : memref<32x8xf32, #tpu.memory_space<vmem>>, vector<32x8xf32>
    tpu.vector_store %arg4[%c0_5, %c0_6], %6 {strides = array<i32>} : memref<32x8xf32, #tpu.memory_space<vmem>>, vector<32x8xf32>,
    return
  }
  func.func @transform_0(%arg0: i32) -> (i32, i32) {
    %c0_i32 = arith.constant 0 : i32
    %c0_i32_0 = arith.constant 0 : i32
    return %arg0, %c0_i32 : i32, i32
  }
  func.func @transform_1(%arg0: i32) -> (i32, i32) {
    %c0_i32 = arith.constant 0 : i32
    %c0_i32_0 = arith.constant 0 : i32
    %c0_i32_1 = arith.constant 0 : i32
    return %c0_i32, %c0_i32_0 : i32, i32
  }
  func.func @transform_2(%arg0: i32) -> (i32, i32) {
    %c0_i32 = arith.constant 0 : i32
    %c0_i32_0 = arith.constant 0 : i32
    %c0_i32_1 = arith.constant 0 : i32
    return %c0_i32, %c0_i32_0 : i32, i32
  }
  func.func @transform_3(%arg0: i32) -> (i32, i32) {
    %c0_i32 = arith.constant 0 : i32
    %c0_i32_0 = arith.constant 0 : i32
    return %arg0, %c0_i32 : i32, i32
  }
}

</mosaic_0001>

<llo_original>
// kernel: tpu_custom_call.1
$region0: #{tpu_custom_call.1}
  #allocation0 [shape = 'u32[]', space=smem, size = 0x4, offset = 0x4, fixed_abs, tag = 'smem constant byte address 0x4 - core index']
  #allocation1 [shape = 'u32[144,128]{1,0:T(1,128)}', space=vmem, size = 0x12000, scoped, tag = 'internal scratch']
  %s0 = inlined_call_operand.vmem [shape: f32[32,16], index: 0, kind: input, shape index: {}]
  %s1 = inlined_call_operand.vmem [shape: bf16[16,8], index: 1, kind: input, shape index: {}]
  %s2 = inlined_call_operand.vmem [shape: f32[1,8], index: 2, kind: input, shape index: {}]
  %s3 = inlined_call_operand.vmem [shape: f32[32,8], index: 3, kind: output, shape index: {}]
  %s4 = sld [smem:[#allocation0]]
  $region22: #{tpu_custom_call.1} parent=0
    _
  %s6 = ssub.s32 1, %s4
  %s7 = scalar_select 0, %s6, %s4
  // Predicated region
  $region2: #{tpu_custom_call.1} parent=0 // pred_check
    _
  $region3: #{tpu_custom_call.1} parent=0 // pred_check_branch
    %9 = sbr.rel (0) target = $region5
  $region4: #{tpu_custom_call.1} parent=0 // pred_region
    _
  $region5: #{tpu_custom_call.1} parent=0 // pred_fallthru
    _
  // Predicated region
  $region6: #{tpu_custom_call.1} parent=0 // pred_check
    _
  $region7: #{tpu_custom_call.1} parent=0 // pred_check_branch
    %11 = sbr.rel (0) target = $region9
  $region8: #{tpu_custom_call.1} parent=0 // pred_region
    _
  $region9: #{tpu_custom_call.1} parent=0 // pred_fallthru
    _
  // Predicated region
  $region10: #{tpu_custom_call.1} parent=0 // pred_check
    _
  $region11: #{tpu_custom_call.1} parent=0 // pred_check_branch
    %13 = sbr.rel (0) target = $region13
  $region12: #{tpu_custom_call.1} parent=0 // pred_region
    _
  $region13: #{tpu_custom_call.1} parent=0 // pred_fallthru
    _
  %v15 = vld [vmem:[%s0] sm:$0xff]
  %v16 = vld [vmem:[%s0 + $0x8] sm:$0xff]
  %v17 = vld [vmem:[%s0 + $0x10] sm:$0xff]
  %v18 = vld [vmem:[%s0 + $0x18] sm:$0xff]
  %v19 = vpack.c.bf16 %v16, %v15
  %v20 = vpack.c.bf16 %v18, %v17
  %v21 = vld [vmem:[%s1] sm:$0xf]
  %v22 = vld [vmem:[%s1 + $0x4] sm:$0xf]
  %v23 = vld [vmem:[%s2] sm:$0x1]
  %v25 = vlaneseq
  %v26 = vshrl.u32 %v25, 7
  %v27 = vsub.s32 0, %v26
  %v28 = vrot.slane %v23, %v27
  %v32 = vunpack.c.l.b16 %v21
  %v33 = vunpack.c.l.b16 %v22
  %v34 = vpack.c.b16 %v33, %v32
  %vm36 = vcmask 130048
  %v38 = vsel %vm36, %v19, 0
  %v41 = vsel %vm36, %v20, 0
  %43 = vmatprep.subr.bf16.mxu0 0
  %44 = vmatpush1.bf16.msra.mxu0 0
  %45 = vmatprep.subr.bf16.mxu0 0
  %46 = vmatpush1.bf16.msra.mxu0 0
  %47 = vmatprep.subr.bf16.mxu0 0
  %48 = vmatpush1.bf16.msra.mxu0 0
  %49 = vmatprep.subr.bf16.mxu0 0
  %50 = vmatpush1.bf16.msra.mxu0 0
  %51 = vmatprep.subr.bf16.mxu0 0
  %52 = vmatpush1.bf16.msra.mxu0 0
  %53 = vmatprep.subr.bf16.mxu0 0
  %54 = vmatpush1.bf16.msra.mxu0 0
  %55 = vmatprep.subr.bf16.mxu0 0
  %56 = vmatpush1.bf16.msra.mxu0 0
  %57 = vmatprep.subr.bf16.mxu0 0
  %58 = vmatpush1.bf16.msra.mxu0 %v34
  %59 = vmatprep.subr.bf16.mxu0 0
  %60 = vmatpush2.bf16.msra.mxu0 0
  %61 = vmatprep.subr.bf16.mxu0 0
  %62 = vmatpush2.bf16.msra.mxu0 0
  %63 = vmatprep.subr.bf16.mxu0 0
  %64 = vmatpush2.bf16.msra.mxu0 0
  %65 = vmatprep.subr.bf16.mxu0 0
  %66 = vmatpush2.bf16.msra.mxu0 0
  %67 = vmatprep.subr.bf16.mxu0 0
  %68 = vmatpush2.bf16.msra.mxu0 0
  %69 = vmatprep.subr.bf16.mxu0 0
  %70 = vmatpush2.bf16.msra.mxu0 0
  %71 = vmatprep.subr.bf16.mxu0 0
  %72 = vmatpush2.bf16.msra.mxu0 0
  %73 = vmatprep.subr.bf16.mxu0 0
  %74 = vmatpush2.bf16.msra.mxu0 0
  %75 = vmatprep.mubr.bf16.mxu0 0
  %76 = vmatmul.mubr.bf16.gmra.mxu0 %v38
  %v77 = vpop.f32.mrf.mxu0
  %v78 = vadd.f32 %v28, %v77
  %v79 = vpop.f32.mrf.mxu0
  %v80 = vpop.f32.mrf.mxu0
  %v81 = vadd.f32 %v28, %v80
  %v82 = vpop.f32.mrf.mxu0
  %83 = vmatprep.mubr.bf16.mxu0 0
  %84 = vmatmul.mubr.bf16.gmra.mxu0 %v41
  %v85 = vpop.f32.mrf.mxu0
  %v86 = vadd.f32 %v28, %v85
  %v87 = vpop.f32.mrf.mxu0
  %v88 = vpop.f32.mrf.mxu0
  %v89 = vadd.f32 %v28, %v88
  %v90 = vpop.f32.mrf.mxu0
  %91 = vdwg.mxu0
  %vm92 = vcmask 64512
  %93 = vst.msk [vmem:[%s3] sm:$0xff] %vm92, %v78
  %94 = vst.msk [vmem:[%s3 + $0x8] sm:$0xff] %vm92, %v81
  %95 = vst.msk [vmem:[%s3 + $0x10] sm:$0xff] %vm92, %v86
  %96 = vst.msk [vmem:[%s3 + $0x18] sm:$0xff] %vm92, %v89
  // Predicated region
  $region14: #{tpu_custom_call.1} parent=0 // pred_check
    _
  $region15: #{tpu_custom_call.1} parent=0 // pred_check_branch
    %98 = sbr.rel (0) target = $region17
  $region16: #{tpu_custom_call.1} parent=0 // pred_region
    _
  $region17: #{tpu_custom_call.1} parent=0 // pred_fallthru
    _
  // Predicated region
  $region18: #{tpu_custom_call.1} parent=0 // pred_check
    _
  $region19: #{tpu_custom_call.1} parent=0 // pred_check_branch
    %100 = sbr.rel (0) target = $region21
  $region20: #{tpu_custom_call.1} parent=0 // pred_region
    _
  $region21: #{tpu_custom_call.1} parent=0 // pred_fallthru
    _

</llo_original>
